<compile_context>
chip_gen: v5e
topology: v5e:2x2
jax: 0.10.0
libtpu: 0.0.40
codegen_flags: <defaults>
</compile_context>

<pallas_src>
import jax
import jax.numpy as jnp
from jax.experimental import pallas as pl
from jax.experimental.pallas import tpu as pltpu

_LANE = 128
_MAX_TILE_ROWS = 1024               # 512-1024-row tiles reach ~85% of HBM roofline
_VMEM_BUDGET = 16 * 1024 * 1024     # double-buffered block footprint budget
_VMEM_LIMIT = 32 * 1024 * 1024      # explicit scoped-VMEM limit (safe v5e/v6e/v7x)
_MIN_PALLAS_BYTES = 256 * 1024      # below this, native XLA concat wins
_MIN_GRID_STEPS = 8                 # >= ~4 pipelined steps per TC on dual-TC v7x


def _round_up(x: int, m: int) -> int:
    return (x + m - 1) // m * m


def _concat_fuse_kernel(xi_ref, xj_ref, o_ref):
    # xi_ref, xj_ref: (TB, D) VMEM tiles; o_ref: (TB, 2*D) VMEM tile.
    # With D % 128 == 0 both stores are lane-aligned, unmasked vst.
    d = xi_ref.shape[-1]
    o_ref[:, :d] = xi_ref[...]
    o_ref[:, d:] = xj_ref[...]


def concat_fuse(x_i: jax.Array, x_j: jax.Array) -> jax.Array:
    """Pallas equivalent of ConcatFuse.forward: cat([x_i, x_j], dim=-1)."""
    assert x_i.shape == x_j.shape and x_i.dtype == x_j.dtype
    assert x_i.ndim == 2, "expected (batch, feat) inputs"
    B, D = x_i.shape
    itemsize = jnp.dtype(x_i.dtype).itemsize

    # Tiny problem: kernel launch + per-grid-step overhead dwarfs the copy.
    if 2 * B * D * itemsize < _MIN_PALLAS_BYTES:
        return jnp.concatenate([x_i, x_j], axis=-1)

    # Sublane packing: 8 rows for 4-byte dtypes, 16 for 2-byte, 32 for 1-byte.
    sub_rows = 8 * max(1, 4 // itemsize)

    # Per-batch-row VMEM footprint: two D-wide input tiles + one 2*D output
    # tile (= 4*D per row), lane-padded to 128, times 2 for double buffering.
    d_pad = _round_up(D, _LANE)
    per_row_bytes = 4 * d_pad * itemsize * 2

    # Very wide D: even a minimum-height tile would blow the VMEM budget.
    if sub_rows * per_row_bytes > _VMEM_BUDGET:
        return jnp.concatenate([x_i, x_j], axis=-1)

    # Tile height from the VMEM budget, rounded to sublane packing.
    tb = _VMEM_BUDGET // per_row_bytes
    tb = max(sub_rows, min(tb, _MAX_TILE_ROWS))
    tb = (tb // sub_rows) * sub_rows

    # Enforce >= _MIN_GRID_STEPS pipelined steps (or as many as the batch
    # height allows at sub_rows granularity) so the software pipeline can
    # overlap input DMA, copy, and writeback.
    step_cap = max(sub_rows, (B // _MIN_GRID_STEPS // sub_rows) * sub_rows)
    tb = min(tb, step_cap)

    grid = (pl.cdiv(B, tb),)

    return pl.pallas_call(
        _concat_fuse_kernel,
        out_shape=jax.ShapeDtypeStruct((B, 2 * D), x_i.dtype),
        grid=grid,
        in_specs=[
            pl.BlockSpec((tb, D), lambda b: (b, 0)),
            pl.BlockSpec((tb, D), lambda b: (b, 0)),
        ],
        out_specs=pl.BlockSpec((tb, 2 * D), lambda b: (b, 0)),
        compiler_params=pltpu.CompilerParams(
            dimension_semantics=("parallel",),   # v7x: shard batch tiles over 2 TCs
            vmem_limit_bytes=_VMEM_LIMIT,
        ),
        cost_estimate=pl.CostEstimate(
            flops=0,
            transcendentals=0,
            bytes_accessed=4 * B * D * itemsize,  # read 2*B*D, write B*2*D
        ),
    )(x_i, x_j)


if __name__ == "__main__":
    key = jax.random.PRNGKey(0)
    k1, k2, k3, k4, k5, k6, k7, k8 = jax.random.split(key, 8)

    # 1) Lane-aligned Pallas path (D % 128 == 0): 8 pipelined grid steps.
    B, D = 1024, 128
    x_i = jax.random.normal(k1, (B, D), dtype=jnp.float32)
    x_j = jax.random.normal(k2, (B, D), dtype=jnp.float32)
    out = concat_fuse(x_i, x_j)
    jax.block_until_ready(out)
    assert out.shape == (B, 2 * D)
    assert jnp.array_equal(out, jnp.concatenate([x_i, x_j], axis=-1))

    # 2) Unaligned-D Pallas path (second store masked, still correct).
    B2, D2 = 512, 96
    y_i = jax.random.normal(k3, (B2, D2), dtype=jnp.float32)
    y_j = jax.random.normal(k4, (B2, D2), dtype=jnp.float32)
    out2 = concat_fuse(y_i, y_j)
    jax.block_until_ready(out2)
    assert jnp.array_equal(out2, jnp.concatenate([y_i, y_j], axis=-1))

    # 3) bf16 path (16-row sublane packing).
    B3, D3 = 512, 256
    w_i = jax.random.normal(k5, (B3, D3), dtype=jnp.bfloat16)
    w_j = jax.random.normal(k6, (B3, D3), dtype=jnp.bfloat16)
    out3 = concat_fuse(w_i, w_j)
    jax.block_until_ready(out3)
    assert jnp.array_equal(out3, jnp.concatenate([w_i, w_j], axis=-1))

    # 4) Tiny-problem gate -> XLA native concat (no kernel launch overhead).
    z_i = jax.random.normal(k7, (8, 32), dtype=jnp.float32)
    z_j = jax.random.normal(k8, (8, 32), dtype=jnp.float32)
    out4 = concat_fuse(z_i, z_j)
    jax.block_until_ready(out4)
    assert jnp.array_equal(out4, jnp.concatenate([z_i, z_j], axis=-1))

    print("KERNEL_OK")
</pallas_src>

<mosaic_0001>
module attributes {stable_mosaic.version = 11 : i64} {
  func.func @_concat_fuse_kernel(%arg0: i32, %arg1: memref<128x128xf32, #tpu.memory_space<vmem>>, %arg2: memref<128x128xf32, #tpu.memory_space<vmem>>, %arg3: memref<128x256xf32, #tpu.memory_space<vmem>>) attributes {dimension_semantics = [#tpu.dimension_semantics<parallel>], iteration_bounds = array<i64: 8>, scalar_prefetch = 0 : i64, scratch_operands = 0 : i64, tpu.core_type = #tpu.core_type<tc>, window_params = [{transform_indices = @transform_0, window_bounds = array<i64: 128, 128>}, {transform_indices = @transform_1, window_bounds = array<i64: 128, 128>}, {transform_indices = @transform_2, window_bounds = array<i64: 128, 256>}]} {
    %c0 = arith.constant 0 : index
    %c0_0 = arith.constant 0 : index
    %0 = vector.load %arg1[%c0, %c0_0] : memref<128x128xf32, #tpu.memory_space<vmem>>, vector<128x128xf32>
    %c0_1 = arith.constant 0 : index
    %c0_2 = arith.constant 0 : index
    %1 = vector.load %arg3[%c0_1, %c0_2] : memref<128x256xf32, #tpu.memory_space<vmem>>, vector<128x128xf32>
    tpu.vector_store %arg3[%c0_1, %c0_2], %0 {strides = array<i32>} : memref<128x256xf32, #tpu.memory_space<vmem>>, vector<128x128xf32>,
    %c0_3 = arith.constant 0 : index
    %c0_4 = arith.constant 0 : index
    %2 = vector.load %arg2[%c0_3, %c0_4] : memref<128x128xf32, #tpu.memory_space<vmem>>, vector<128x128xf32>
    %c0_5 = arith.constant 0 : index
    %c128 = arith.constant 128 : index
    %3 = vector.load %arg3[%c0_5, %c128] : memref<128x256xf32, #tpu.memory_space<vmem>>, vector<128x128xf32>
    tpu.vector_store %arg3[%c0_5, %c128], %2 {strides = array<i32>} : memref<128x256xf32, #tpu.memory_space<vmem>>, vector<128x128xf32>,
    return
  }
  func.func @transform_0(%arg0: i32) -> (i32, i32) {
    %c0_i32 = arith.constant 0 : i32
    %c0_i32_0 = arith.constant 0 : i32
    return %arg0, %c0_i32 : i32, i32
  }
  func.func @transform_1(%arg0: i32) -> (i32, i32) {
    %c0_i32 = arith.constant 0 : i32
    %c0_i32_0 = arith.constant 0 : i32
    return %arg0, %c0_i32 : i32, i32
  }
  func.func @transform_2(%arg0: i32) -> (i32, i32) {
    %c0_i32 = arith.constant 0 : i32
    %c0_i32_0 = arith.constant 0 : i32
    return %arg0, %c0_i32 : i32, i32
  }
}

</mosaic_0001>

<llo_original>
// kernel: tpu_custom_call.1
$region0: #{tpu_custom_call.1}
  #allocation0 [shape = 'u32[]', space=smem, size = 0x4, offset = 0x4, fixed_abs, tag = 'smem constant byte address 0x4 - core index']
  #allocation1 [shape = 'u32[72,128]{1,0:T(1,128)}', space=vmem, size = 0x9000, scoped, tag = 'internal scratch']
  %s0 = inlined_call_operand.hbm [shape: f32[1024,128], index: 0, kind: input, shape index: {}]
  %s1 = inlined_call_operand.hbm [shape: f32[1024,128], index: 1, kind: input, shape index: {}]
  %s2 = inlined_call_operand.hbm [shape: f32[1024,256], index: 2, kind: output, shape index: {}]
  %s3 = sld [smem:[#allocation0]]
  $region49: #{tpu_custom_call.1} parent=0
    _
  %s5 = ssub.s32 1, %s3
  %s6 = scalar_select 0, %s5, %s3
  $region1: #{tpu_custom_call.1} parent=0
    #allocation2 [shape = 'u8[131072]{0}', space=vmem, size = 0x20000, scoped, tag = 'input window, operand 0']
    #allocation3 [shape = 's32[2]{0}', space=sflag, size = 0x8, scoped, tag = 'scoped memory for tpu_custom_call.1']
    #allocation4 [shape = 's32[2]{0}', space=sflag, size = 0x8, scoped, tag = 'scoped memory for tpu_custom_call.1']
    #allocation5 [shape = 'u8[131072]{0}', space=vmem, size = 0x20000, scoped, tag = 'input window, operand 1']
    #allocation6 [shape = 's32[2]{0}', space=sflag, size = 0x8, scoped, tag = 'scoped memory for tpu_custom_call.1']
    #allocation7 [shape = 'u8[262144]{0}', space=vmem, size = 0x40000, scoped, tag = 'output window, operand 0']
    %7 = vsyncpa [#allocation3], 0
    %s8 = scalar_lea.sflag [#allocation3], 1
    %9 = vsyncpa %s8, 0
    %10 = vsyncpa [#allocation6], 0
    %s11 = scalar_lea.sflag [#allocation6], 1
    %12 = vsyncpa %s11, 0
    %13 = vsyncpa [#allocation4], 0
    %s14 = scalar_lea.sflag [#allocation4], 1
    %15 = vsyncpa %s14, 0
    loop: start=0, step=1, limit=10
    $region2: #{tpu_custom_call.1} parent=1 // loop_pre_header
      _
    $region3: #{tpu_custom_call.1} parent=1 // loop_header
      %s17 = sphi 0, %s21
      %p18 = scmp.ge.s32.totalorder %s17, 10
      %s27 = sphi 0, %s29
      %s30 = sphi 0, %s27
      %s31 = sphi 0, %s30
      %s47 = sphi 0, %s31
      %s53 = sphi 0, %s55
      %s56 = sphi 0, %s53
      %s57 = sphi 0, %s56
      %s73 = sphi 0, %s57
      %s79 = sphi 0, %s81
      %s82 = sphi 0, %s79
      %s83 = sphi 0, %s82
      %s99 = sphi 0, %s83
    $region4: #{tpu_custom_call.1} parent=1 // loop_header_branch
      %20 = sbr.rel (%p18) target = $region8
    $region5: #{tpu_custom_call.1} parent=1 // loop_body
      %s22 = ssub.s32 %s17, 1
      %s23 = ssub.s32 %s17, 2
      %s24 = sadd.s32 %s17, 1
      %s25 = ssub.s32 %s17, %s24
      %p26 = scmp.eq.s32.totalorder %s25, 0
      %s28 = sadd.s32 %s27, 1
      %s29 = scalar_select %p26, %s27, %s28
      %p32 = pneg %p26
      %p33 = scmp.eq.s32.totalorder %s17, 7
      %p34 = por %p32, %p33
      %p35 = scmp.ne.s32.totalorder %s27, %s30
      %p36 = scmp.eq.s32.totalorder %s17, 0
      %p37 = por %p35, %p36
      %p38 = scmp.ne.s32.totalorder %s27, %s30
      %p39 = scmp.eq.s32.totalorder %s22, 7
      %p40 = por %p38, %p39
      %p41 = scmp.ne.s32.totalorder %s30, %s31
      %p42 = scmp.eq.s32.totalorder %s22, 0
      %p43 = por %p41, %p42
      %p44 = scmp.ne.s32.totalorder %s30, %s31
      %p45 = scmp.eq.s32.totalorder %s23, 7
      %p46 = por %p44, %p45
      %p48 = scmp.ne.s32.totalorder %s31, %s47
      %p49 = scmp.eq.s32.totalorder %s23, 0
      %p50 = por %p48, %p49
      %s51 = ssub.s32 %s17, %s24
      %p52 = scmp.eq.s32.totalorder %s51, 0
      %s54 = sadd.s32 %s53, 1
      %s55 = scalar_select %p52, %s53, %s54
      %p58 = pneg %p52
      %p59 = scmp.eq.s32.totalorder %s17, 7
      %p60 = por %p58, %p59
      %p61 = scmp.ne.s32.totalorder %s53, %s56
      %p62 = scmp.eq.s32.totalorder %s17, 0
      %p63 = por %p61, %p62
      %p64 = scmp.ne.s32.totalorder %s53, %s56
      %p65 = scmp.eq.s32.totalorder %s22, 7
      %p66 = por %p64, %p65
      %p67 = scmp.ne.s32.totalorder %s56, %s57
      %p68 = scmp.eq.s32.totalorder %s22, 0
      %p69 = por %p67, %p68
      %p70 = scmp.ne.s32.totalorder %s56, %s57
      %p71 = scmp.eq.s32.totalorder %s23, 7
      %p72 = por %p70, %p71
      %p74 = scmp.ne.s32.totalorder %s57, %s73
      %p75 = scmp.eq.s32.totalorder %s23, 0
      %p76 = por %p74, %p75
      %s77 = ssub.s32 %s17, %s24
      %p78 = scmp.eq.s32.totalorder %s77, 0
      %s80 = sadd.s32 %s79, 1
      %s81 = scalar_select %p78, %s79, %s80
      %p84 = pneg %p78
      %p85 = scmp.eq.s32.totalorder %s17, 7
      %p86 = por %p84, %p85
      %p87 = scmp.ne.s32.totalorder %s79, %s82
      %p88 = scmp.eq.s32.totalorder %s17, 0
      %p89 = por %p87, %p88
      %p90 = scmp.ne.s32.totalorder %s79, %s82
      %p91 = scmp.eq.s32.totalorder %s22, 7
      %p92 = por %p90, %p91
      %p93 = scmp.ne.s32.totalorder %s82, %s83
      %p94 = scmp.eq.s32.totalorder %s22, 0
      %p95 = por %p93, %p94
      %p96 = scmp.ne.s32.totalorder %s82, %s83
      %p97 = scmp.eq.s32.totalorder %s23, 7
      %p98 = por %p96, %p97
      %p100 = scmp.ne.s32.totalorder %s83, %s99
      %p101 = scmp.eq.s32.totalorder %s23, 0
      %p102 = por %p100, %p101
      %p103 = scmp.le.s32.totalorder 1, %s17
      %p104 = scmp.lt.s32.totalorder %s17, 9
      %p105 = pnand %p103, %p104
      %p106 = pneg %p105
      // Predicated region
      $region9: #{tpu_custom_call.1} parent=5 // pred_check
        _
      $region10: #{tpu_custom_call.1} parent=5 // pred_check_branch
        %108 = sbr.rel (%p105) target = $region12
      $region11: #{tpu_custom_call.1} parent=5 // pred_region
        %s109 = ssub.s32 %s17, 1
      $region12: #{tpu_custom_call.1} parent=5 // pred_fallthru
        _
      %p110 = scmp.lt.s32.totalorder %s17, 8
      // Predicated region
      $region13: #{tpu_custom_call.1} parent=5 // pred_check
        %p111 = pneg %p110
      $region14: #{tpu_custom_call.1} parent=5 // pred_check_branch
        %113 = sbr.rel (%p111) target = $region16
      $region15: #{tpu_custom_call.1} parent=5 // pred_region
        // Predicated region
        $region17: #{tpu_custom_call.1} parent=15 // pred_check
          %p114 = pneg %p37
        $region18: #{tpu_custom_call.1} parent=15 // pred_check_branch
          %116 = sbr.rel (%p114) target = $region20
        $region19: #{tpu_custom_call.1} parent=15 // pred_region
          %s117 = sand.u32 %s27, 1
          %s118 = scalar_lea.sflag [#allocation3], %s117
          %s119 = sand.u32 %s27, 1
          %s120 = smul.addr %s119, 128
          %s121 = scalar_lea.vmem [#allocation2], %s120
          %s122 = smul.u32 16, %s17
          %124 = vsyncadd %s118, 0
          %s125 = smul.addr %s122, 8
          %s126 = scalar_lea.hbm %s0, %s125
          %s127 = sshll.u32 %s126, 4
          %s128 = int_to_ptr.hbm [resolvable:$true] %s127
          %s129 = sshll.u32 %s121, 4
          %s130 = int_to_ptr.vmem [resolvable:$true] %s129
          %135 = dma.hbm_to_vmem [thread:$0]  %s128, 2048, %s130, %s118, 128, 128, 8
        $region20: #{tpu_custom_call.1} parent=15 // pred_fallthru
          _
        // Predicated region
        $region21: #{tpu_custom_call.1} parent=15 // pred_check
          %p136 = pneg %p63
        $region22: #{tpu_custom_call.1} parent=15 // pred_check_branch
          %138 = sbr.rel (%p136) target = $region24
        $region23: #{tpu_custom_call.1} parent=15 // pred_region
          %s139 = sand.u32 %s53, 1
          %s140 = scalar_lea.sflag [#allocation6], %s139
          %s141 = sand.u32 %s53, 1
          %s142 = smul.addr %s141, 128
          %s143 = scalar_lea.vmem [#allocation5], %s142
          %s144 = smul.u32 16, %s17
          %146 = vsyncadd %s140, 0
          %s147 = smul.addr %s144, 8
          %s148 = scalar_lea.hbm %s1, %s147
          %s149 = sshll.u32 %s148, 4
          %s150 = int_to_ptr.hbm [resolvable:$true] %s149
          %s151 = sshll.u32 %s143, 4
          %s152 = int_to_ptr.vmem [resolvable:$true] %s151
          %157 = dma.hbm_to_vmem [thread:$0]  %s150, 2048, %s152, %s140, 128, 128, 8
        $region24: #{tpu_custom_call.1} parent=15 // pred_fallthru
          _
      $region16: #{tpu_custom_call.1} parent=5 // pred_fallthru
        _
      %p158 = scmp.le.s32.totalorder 1, %s17
      %p159 = scmp.lt.s32.totalorder %s17, 9
      %p160 = pnand %p158, %p159
      %p161 = pneg %p160
      // Predicated region
      $region25: #{tpu_custom_call.1} parent=5 // pred_check
        _
      $region26: #{tpu_custom_call.1} parent=5 // pred_check_branch
        %163 = sbr.rel (%p160) target = $region28
      $region27: #{tpu_custom_call.1} parent=5 // pred_region
        %s164 = ssub.s32 %s17, 1
        %s165 = sand.u32 %s30, 1
        %s166 = scalar_lea.sflag [#allocation3], %s165
        %s167 = sand.u32 %s30, 1
        %s168 = smul.addr %s167, 128
        %s169 = scalar_lea.vmem [#allocation2], %s168
        // Predicated region
        $region29: #{tpu_custom_call.1} parent=27 // pred_check
          %p170 = pneg %p43
        $region30: #{tpu_custom_call.1} parent=27 // pred_check_branch
          %172 = sbr.rel (%p170) target = $region32
        $region31: #{tpu_custom_call.1} parent=27 // pred_region
          %174 = dma.done %s166, 2048
        $region32: #{tpu_custom_call.1} parent=27 // pred_fallthru
          _
        %s175 = sand.u32 %s56, 1
        %s176 = scalar_lea.sflag [#allocation6], %s175
        %s177 = sand.u32 %s56, 1
        %s178 = smul.addr %s177, 128
        %s179 = scalar_lea.vmem [#allocation5], %s178
        // Predicated region
        $region33: #{tpu_custom_call.1} parent=27 // pred_check
          %p180 = pneg %p69
        $region34: #{tpu_custom_call.1} parent=27 // pred_check_branch
          %182 = sbr.rel (%p180) target = $region36
        $region35: #{tpu_custom_call.1} parent=27 // pred_region
          %184 = dma.done %s176, 2048
        $region36: #{tpu_custom_call.1} parent=27 // pred_fallthru
          _
        %s185 = sand.u32 %s30, 1
        %s186 = scalar_lea.sflag [#allocation3], %s185
        %s187 = sand.u32 %s30, 1
        %s188 = smul.addr %s187, 128
        %s189 = scalar_lea.vmem [#allocation2], %s188
        %p190 = pneg %p43
        %p191 = pneg %p40
        %s192 = sand.u32 %s56, 1
        %s193 = scalar_lea.sflag [#allocation6], %s192
        %s194 = sand.u32 %s56, 1
        %s195 = smul.addr %s194, 128
        %s196 = scalar_lea.vmem [#allocation5], %s195
        %p197 = pneg %p69
        %p198 = pneg %p66
        %p199 = pneg %p95
        %p200 = pneg %p92
        %s201 = sand.u32 %s82, 1
        %s202 = scalar_lea.sflag [#allocation4], %s201
        %s203 = sand.u32 %s82, 1
        %s204 = smul.addr %s203, 256
        %s205 = scalar_lea.vmem [#allocation7], %s204
        %s206 = smul.u32 16, %s22
        %s207 = smul.u32 16, %s22
        %s208 = smul.u32 16, %s22
        %v209 = vld [vmem:[%s169] sm:$0xff]
        %v210 = vld [vmem:[%s169 + $0x8] sm:$0xff]
        %v211 = vld [vmem:[%s169 + $0x10] sm:$0xff]
        %v212 = vld [vmem:[%s169 + $0x18] sm:$0xff]
        %v213 = vld [vmem:[%s169 + $0x20] sm:$0xff]
        %v214 = vld [vmem:[%s169 + $0x28] sm:$0xff]
        %v215 = vld [vmem:[%s169 + $0x30] sm:$0xff]
        %v216 = vld [vmem:[%s169 + $0x38] sm:$0xff]
        %v217 = vld [vmem:[%s169 + $0x40] sm:$0xff]
        %v218 = vld [vmem:[%s169 + $0x48] sm:$0xff]
        %v219 = vld [vmem:[%s169 + $0x50] sm:$0xff]
        %v220 = vld [vmem:[%s169 + $0x58] sm:$0xff]
        %v221 = vld [vmem:[%s169 + $0x60] sm:$0xff]
        %v222 = vld [vmem:[%s169 + $0x68] sm:$0xff]
        %v223 = vld [vmem:[%s169 + $0x70] sm:$0xff]
        %v224 = vld [vmem:[%s169 + $0x78] sm:$0xff]
        %225 = vst [vmem:[%s205] sm:$0xff] %v209
        %226 = vst [vmem:[%s205 + $0x10] sm:$0xff] %v210
        %227 = vst [vmem:[%s205 + $0x20] sm:$0xff] %v211
        %228 = vst [vmem:[%s205 + $0x30] sm:$0xff] %v212
        %229 = vst [vmem:[%s205 + $0x40] sm:$0xff] %v213
        %230 = vst [vmem:[%s205 + $0x50] sm:$0xff] %v214
        %231 = vst [vmem:[%s205 + $0x60] sm:$0xff] %v215
        %232 = vst [vmem:[%s205 + $0x70] sm:$0xff] %v216
        %233 = vst [vmem:[%s205 + $0x80] sm:$0xff] %v217
        %234 = vst [vmem:[%s205 + $0x90] sm:$0xff] %v218
        %235 = vst [vmem:[%s205 + $0xa0] sm:$0xff] %v219
        %236 = vst [vmem:[%s205 + $0xb0] sm:$0xff] %v220
        %237 = vst [vmem:[%s205 + $0xc0] sm:$0xff] %v221
        %238 = vst [vmem:[%s205 + $0xd0] sm:$0xff] %v222
        %239 = vst [vmem:[%s205 + $0xe0] sm:$0xff] %v223
        %240 = vst [vmem:[%s205 + $0xf0] sm:$0xff] %v224
        %v241 = vld [vmem:[%s179] sm:$0xff]
        %v242 = vld [vmem:[%s179 + $0x8] sm:$0xff]
        %v243 = vld [vmem:[%s179 + $0x10] sm:$0xff]
        %v244 = vld [vmem:[%s179 + $0x18] sm:$0xff]
        %v245 = vld [vmem:[%s179 + $0x20] sm:$0xff]
        %v246 = vld [vmem:[%s179 + $0x28] sm:$0xff]
        %v247 = vld [vmem:[%s179 + $0x30] sm:$0xff]
        %v248 = vld [vmem:[%s179 + $0x38] sm:$0xff]
        %v249 = vld [vmem:[%s179 + $0x40] sm:$0xff]
        %v250 = vld [vmem:[%s179 + $0x48] sm:$0xff]
        %v251 = vld [vmem:[%s179 + $0x50] sm:$0xff]
        %v252 = vld [vmem:[%s179 + $0x58] sm:$0xff]
        %v253 = vld [vmem:[%s179 + $0x60] sm:$0xff]
        %v254 = vld [vmem:[%s179 + $0x68] sm:$0xff]
        %v255 = vld [vmem:[%s179 + $0x70] sm:$0xff]
        %v256 = vld [vmem:[%s179 + $0x78] sm:$0xff]
        %257 = vst [vmem:[%s205 + $0x8] sm:$0xff] %v241
        %258 = vst [vmem:[%s205 + $0x18] sm:$0xff] %v242
        %259 = vst [vmem:[%s205 + $0x28] sm:$0xff] %v243
        %260 = vst [vmem:[%s205 + $0x38] sm:$0xff] %v244
        %261 = vst [vmem:[%s205 + $0x48] sm:$0xff] %v245
        %262 = vst [vmem:[%s205 + $0x58] sm:$0xff] %v246
        %263 = vst [vmem:[%s205 + $0x68] sm:$0xff] %v247
        %264 = vst [vmem:[%s205 + $0x78] sm:$0xff] %v248
        %265 = vst [vmem:[%s205 + $0x88] sm:$0xff] %v249
        %266 = vst [vmem:[%s205 + $0x98] sm:$0xff] %v250
        %267 = vst [vmem:[%s205 + $0xa8] sm:$0xff] %v251
        %268 = vst [vmem:[%s205 + $0xb8] sm:$0xff] %v252
        %269 = vst [vmem:[%s205 + $0xc8] sm:$0xff] %v253
        %270 = vst [vmem:[%s205 + $0xd8] sm:$0xff] %v254
        %271 = vst [vmem:[%s205 + $0xe8] sm:$0xff] %v255
        %272 = vst [vmem:[%s205 + $0xf8] sm:$0xff] %v256
        %s273 = sand.u32 %s82, 1
        %s274 = scalar_lea.sflag [#allocation4], %s273
        %s275 = sand.u32 %s82, 1
        %s276 = smul.addr %s275, 256
        %s277 = scalar_lea.vmem [#allocation7], %s276
        // Predicated region
        $region37: #{tpu_custom_call.1} parent=27 // pred_check
          %p278 = pneg %p92
        $region38: #{tpu_custom_call.1} parent=27 // pred_check_branch
          %280 = sbr.rel (%p278) target = $region40
        $region39: #{tpu_custom_call.1} parent=27 // pred_region
          %s281 = smul.u32 16, %s22
          %283 = vsyncadd %s274, 0
          %s284 = smul.addr %s281, 2
          %s285 = smul.addr %s284, 8
          %s286 = scalar_lea.hbm %s2, %s285
          %s287 = sshll.u32 %s277, 4
          %s288 = int_to_ptr.vmem [resolvable:$true] %s287
          %s289 = sshll.u32 %s286, 4
          %s290 = int_to_ptr.hbm [resolvable:$true] %s289
          %295 = dma.vmem_to_hbm [thread:$0]  %s288, 4096, %s290, %s274, 256, 256, 16
        $region40: #{tpu_custom_call.1} parent=27 // pred_fallthru
          _
      $region28: #{tpu_custom_call.1} parent=5 // pred_fallthru
        _
      %p296 = scmp.le.s32.totalorder 2, %s17
      // Predicated region
      $region41: #{tpu_custom_call.1} parent=5 // pred_check
        %p297 = pneg %p296
      $region42: #{tpu_custom_call.1} parent=5 // pred_check_branch
        %299 = sbr.rel (%p297) target = $region44
      $region43: #{tpu_custom_call.1} parent=5 // pred_region
        %s300 = ssub.s32 %s17, 2
        // Predicated region
        $region45: #{tpu_custom_call.1} parent=43 // pred_check
          %p301 = pneg %p98
        $region46: #{tpu_custom_call.1} parent=43 // pred_check_branch
          %303 = sbr.rel (%p301) target = $region48
        $region47: #{tpu_custom_call.1} parent=43 // pred_region
          %s304 = sand.u32 %s83, 1
          %s305 = scalar_lea.sflag [#allocation4], %s304
          %s306 = sand.u32 %s83, 1
          %s307 = smul.addr %s306, 256
          %s308 = scalar_lea.vmem [#allocation7], %s307
          %310 = dma.done %s305, 4096
        $region48: #{tpu_custom_call.1} parent=43 // pred_fallthru
          _
      $region44: #{tpu_custom_call.1} parent=5 // pred_fallthru
        _
    $region6: #{tpu_custom_call.1} parent=1 // loop_footer
      %s21 = sadd.s32 1, %s17
    $region7: #{tpu_custom_call.1} parent=1 // loop_footer_branch
      %16 = sbr.rel target = $region3
    $region8: #{tpu_custom_call.1} parent=1 // loop_exit
      _
    %311 = vsyncpa [#allocation3], 1
    %s312 = scalar_lea.sflag [#allocation3], 1
    %313 = vsyncpa %s312, 1
    %314 = vsyncpa [#allocation6], 1
    %s315 = scalar_lea.sflag [#allocation6], 1
    %316 = vsyncpa %s315, 1
    %317 = vsyncpa [#allocation4], 1
    %s318 = scalar_lea.sflag [#allocation4], 1
    %319 = vsyncpa %s318, 1

</llo_original>
